<compile_context>
chip_gen: v7x
topology: tpu7x:2x2x1
jax: 0.10.0
libtpu: 0.0.40
codegen_flags: <defaults>
</compile_context>

<pallas_src>
import math

import jax
import jax.numpy as jnp
from jax.experimental import pallas as pl
from jax.experimental.pallas import tpu as pltpu

DEFAULT_ANCHORS = [[10, 13, 16, 30, 33, 23],
                   [30, 61, 62, 45, 59, 119],
                   [116, 90, 156, 198, 373, 326]]
DEFAULT_STRIDES = [8.0, 16.0, 32.0]


def _round_up(v, m):
    return (v + m - 1) // m * m


# ----------------------------------------------------------------------------
# Fused kernel: 1x1 conv (MXU) + sigmoid (EUP) + YOLO decode (VPU)
# ----------------------------------------------------------------------------
def _yolo_head_kernel(x_ref,      # (1, C, T)  activations, channels-first, lane axis = spatial
                      w_ref,      # (K, C)     1x1 conv weight
                      coef_ref,   # (K, 8)     [bias, alpha, gamma, mask_x, mask_y, 0, 0, 0]
                      cxy_ref,    # (2, T)     per-column additive constants (grid*stride - 0.5*stride)
                      o_ref):     # (1, K, T)  decoded predictions (channel-major)
    p = jnp.dot(w_ref[...], x_ref[0], preferred_element_type=jnp.float32)
    p = p + coef_ref[:, 0:1]                                       # + bias
    y = jax.nn.sigmoid(p)                                          # (K, T)
    add = coef_ref[:, 3:4] * cxy_ref[0:1, :] + coef_ref[:, 4:5] * cxy_ref[1:2, :]
    # xy: 2*s*y + (g*s - 0.5*s);  wh: 4*anchor*y^2;  conf/cls: y
    o_ref[0] = y * (coef_ref[:, 1:2] + y * coef_ref[:, 2:3]) + add


def _decode_layer(x, w, bias, anc, stride, no, napg, tile_s, mxu_dtype):
    """Decode one detection layer.  Returns (bs, napg*ny*nx, no) float32."""
    bs, C, ny, nx = map(int, x.shape)
    K = napg * no
    S = ny * nx
    s = float(stride)

    tile = min(tile_s, _round_up(S, 128))        # lane-dense, capped padding
    S_pad = _round_up(S, tile)
    n_tiles = S_pad // tile

    # Per-channel decode coefficients (channel k -> anchor k//no, output k%no).
    o_idx = jnp.arange(K, dtype=jnp.int32) % no
    a_idx = jnp.arange(K, dtype=jnp.int32) // no
    anc_sel = jnp.where(o_idx == 2, anc[a_idx, 0],
                        jnp.where(o_idx == 3, anc[a_idx, 1], 0.0))
    alpha = jnp.where(o_idx < 2, 2.0 * s, jnp.where(o_idx < 4, 0.0, 1.0))
    zeros = jnp.zeros((K,), jnp.float32)
    coef = jnp.stack([bias.astype(jnp.float32),
                      alpha.astype(jnp.float32),
                      (4.0 * anc_sel).astype(jnp.float32),
                      (o_idx == 0).astype(jnp.float32),
                      (o_idx == 1).astype(jnp.float32),
                      zeros, zeros, zeros], axis=1)             # (K, 8)

    # Per-column additive constants: grid*stride - 0.5*stride  (x row, y row).
    pidx = jnp.arange(S, dtype=jnp.int32)
    gx = (pidx % nx).astype(jnp.float32) * s - 0.5 * s
    gy = (pidx // nx).astype(jnp.float32) * s - 0.5 * s
    cxy = jnp.pad(jnp.stack([gx, gy]), ((0, 0), (0, S_pad - S)))    # (2, S_pad)

    # Activations: NCHW -> (bs, C, S) (free reshape); pad only the spatial tail.
    xf = x.reshape(bs, C, S).astype(mxu_dtype)
    if S_pad != S:
        xf = jnp.pad(xf, ((0, 0), (0, 0), (0, S_pad - S)))
    wf = w.reshape(K, C).astype(mxu_dtype)

    # VMEM budget: double-buffered x/out/cxy blocks + resident w/coef blocks.
    in_bytes = jnp.dtype(mxu_dtype).itemsize
    est = 2 * (C * tile * in_bytes + K * tile * 4 + 2 * tile * 4
               + K * C * in_bytes + K * 8 * 4)
    vmem_limit = None
    if est > 12 * 2**20:                              # approaching default scoped VMEM
        vmem_limit = int(min(2 * est + (4 << 20), 48 << 20))   # < v7x 64 MiB physical

    out = pl.pallas_call(
        _yolo_head_kernel,
        out_shape=jax.ShapeDtypeStruct((bs, K, S_pad), jnp.float32),
        grid_spec=pltpu.PrefetchScalarGridSpec(
            num_scalar_prefetch=0,
            grid=(n_tiles, bs),                       # batch innermost: w/coef/cxy fetched once per tile
            in_specs=[
                pl.BlockSpec((1, C, tile), lambda j, b: (b, 0, j)),
                pl.BlockSpec((K, C), lambda j, b: (0, 0)),
                pl.BlockSpec((K, 8), lambda j, b: (0, 0)),
                pl.BlockSpec((2, tile), lambda j, b: (0, j)),
            ],
            out_specs=pl.BlockSpec((1, K, tile), lambda j, b: (b, 0, j)),
        ),
        compiler_params=pltpu.CompilerParams(
            dimension_semantics=("parallel", "parallel"),
            vmem_limit_bytes=vmem_limit),
    )(xf, wf, coef, cxy)

    # Anchor-major reorder to the module's (bs, 3*S, no) output contract.
    o_l = out[:, :, :S].reshape(bs, napg, no, S).transpose(0, 1, 3, 2)
    return o_l.reshape(bs, napg * S, no)


def yolov5_head_forward(xs, params, anchor_grid, strides, num_cls,
                        tile_s=512, mxu_dtype=jnp.float32):
    """Inference forward of YOLOv5Head -> (bs, sum_l 3*ny_l*nx_l, num_cls+5).

    mxu_dtype=jnp.bfloat16 halves the dominant HBM read of x on v6e/v7x but
    needs a looser (~1e-2) verification tolerance; default f32 keeps 1e-4.
    """
    # TODO(synk): training-mode branch (raw permuted conv outputs + normalized
    # anchors) is pure layout glue and is not implemented here.
    no = num_cls + 5
    napg = anchor_grid.shape[1]
    z = []
    for x, (w, b), anc, s in zip(xs, params, anchor_grid, strides):
        z.append(_decode_layer(x, w, b, anc, s, no, napg, tile_s, mxu_dtype))
    return jnp.concatenate(z, axis=1)


# ----------------------------------------------------------------------------
# Deterministic parameter init (mirrors the module's __init__ bias tweaks)
# ----------------------------------------------------------------------------
def init_head_params(key, channels, num_cls, strides, napg=3):
    no = num_cls + 5
    K = no * napg
    params = []
    for c, s in zip(channels, strides):
        key, kw, kb = jax.random.split(key, 3)
        bound = 1.0 / math.sqrt(c)
        w = jax.random.uniform(kw, (K, c, 1, 1), jnp.float32, -bound, bound)
        b = jax.random.uniform(kb, (K,), jnp.float32, -bound, bound)
        bb = b.reshape(napg, no)
        bb = bb.at[:, 4].add(math.log(8.0 / (640.0 / s) ** 2))
        bb = bb.at[:, 5:].add(math.log(0.6 / (num_cls - 0.99)))
        params.append((w, bb.reshape(-1)))
    return params


# ----------------------------------------------------------------------------
# Pure-JAX reference (mirrors the PyTorch forward) for verification
# ----------------------------------------------------------------------------
def reference_forward(xs, params, anchor_grid, strides, num_cls):
    no = num_cls + 5
    zs = []
    for x, (w, b), anc, s in zip(xs, params, anchor_grid, strides):
        bs, C, ny, nx = x.shape
        K = w.shape[0]
        p = jnp.einsum('bchw,kc->bkhw', x, w.reshape(K, C)) + b[None, :, None, None]
        p = p.reshape(bs, 3, no, ny, nx).transpose(0, 1, 3, 4, 2)     # (bs,3,ny,nx,no)
        y = jax.nn.sigmoid(p)
        yv, xv = jnp.meshgrid(jnp.arange(ny), jnp.arange(nx), indexing='ij')
        grid = jnp.stack((xv, yv), 2).reshape(1, 1, ny, nx, 2).astype(jnp.float32)
        xy = (y[..., 0:2] * 2.0 - 0.5 + grid) * s
        wh = (y[..., 2:4] * 2.0) ** 2 * anc.reshape(1, 3, 1, 1, 2)
        y = jnp.concatenate([xy, wh, y[..., 4:]], axis=-1)
        zs.append(y.reshape(bs, -1, no))
    return jnp.concatenate(zs, axis=1)


if __name__ == "__main__":
    key = jax.random.PRNGKey(0)

    num_cls = 3                       # num_outputs = 8, K = 24
    c3, c4, c5 = 8, 16, 32
    bs = 2
    strides = DEFAULT_STRIDES
    # image size 128 -> feature maps 16x16, 8x8, 4x4 at strides 8/16/32
    spatials = [16, 8, 4]

    anchor_grid = jnp.asarray(DEFAULT_ANCHORS, jnp.float32).reshape(3, 3, 2)

    key, k3, k4, k5 = jax.random.split(key, 4)
    xs = [
        jax.random.normal(k3, (bs, c3, spatials[0], spatials[0]), jnp.float32),
        jax.random.normal(k4, (bs, c4, spatials[1], spatials[1]), jnp.float32),
        jax.random.normal(k5, (bs, c5, spatials[2], spatials[2]), jnp.float32),
    ]

    params = init_head_params(key, (c3, c4, c5), num_cls, strides)

    out = yolov5_head_forward(xs, params, anchor_grid, strides, num_cls)
    out = jax.block_until_ready(out)

    ref = reference_forward(xs, params, anchor_grid, strides, num_cls)
    assert out.shape == (bs, 3 * sum(s * s for s in spatials), num_cls + 5), out.shape
    assert jnp.allclose(out, ref, atol=1e-4, rtol=1e-4), float(jnp.max(jnp.abs(out - ref)))

    print("KERNEL_OK")
</pallas_src>

<mosaic_0001>
module attributes {stable_mosaic.version = 11 : i64} {
  func.func @_yolo_head_kernel(%arg0: i32, %arg1: i32, %arg2: memref<1x8x256xf32, #tpu.memory_space<vmem>>, %arg3: memref<24x8xf32, #tpu.memory_space<vmem>>, %arg4: memref<24x8xf32, #tpu.memory_space<vmem>>, %arg5: memref<2x256xf32, #tpu.memory_space<vmem>>, %arg6: memref<1x24x256xf32, #tpu.memory_space<vmem>>) attributes {dimension_semantics = [#tpu.dimension_semantics<parallel>, #tpu.dimension_semantics<parallel>], iteration_bounds = array<i64: 1, 2>, scalar_prefetch = 0 : i64, scratch_operands = 0 : i64, tpu.core_type = #tpu.core_type<tc>, window_params = [{transform_indices = @transform_0, window_bounds = array<i64: 1, 8, 256>}, {pipeline_mode = #tpu.pipeline_mode<synchronous>, transform_indices = @transform_1, window_bounds = array<i64: 24, 8>}, {pipeline_mode = #tpu.pipeline_mode<synchronous>, transform_indices = @transform_2, window_bounds = array<i64: 24, 8>}, {transform_indices = @transform_3, window_bounds = array<i64: 2, 256>}, {transform_indices = @transform_4, window_bounds = array<i64: 1, 24, 256>}]} {
    %c0 = arith.constant 0 : index
    %c0_0 = arith.constant 0 : index
    %0 = vector.load %arg3[%c0, %c0_0] : memref<24x8xf32, #tpu.memory_space<vmem>>, vector<24x8xf32>
    %c0_1 = arith.constant 0 : index
    %c0_2 = arith.constant 0 : index
    %c0_3 = arith.constant 0 : index
    %1 = vector.load %arg2[%c0_1, %c0_2, %c0_3] : memref<1x8x256xf32, #tpu.memory_space<vmem>>, vector<1x8x256xf32>
    %2 = vector.shape_cast %1 : vector<1x8x256xf32> to vector<8x256xf32>
    %cst = arith.constant dense<0.000000e+00> : vector<24x256xf32>
    %3 = tpu.matmul %0, %2, %cst {dimension_numbers = #tpu.dot_dimension_numbers<[1], [0], [0], [1], [0, 0, 1, 1], [], []>} : vector<24x8xf32>, vector<8x256xf32>, vector<24x256xf32> -> vector<24x256xf32>
    %c0_4 = arith.constant 0 : index
    %c0_5 = arith.constant 0 : index
    %4 = vector.load %arg4[%c0_4, %c0_5] : memref<24x8xf32, #tpu.memory_space<vmem>>, vector<24x1xf32>
    %5 = vector.broadcast %4 : vector<24x1xf32> to vector<24x256xf32>
    %6 = arith.addf %3, %5 : vector<24x256xf32>
    %7 = arith.negf %6 : vector<24x256xf32>
    %8 = math.exp %7 : vector<24x256xf32>
    %cst_6 = arith.constant 1.000000e+00 : f32
    %9 = vector.broadcast %cst_6 : f32 to vector<24x256xf32>
    %10 = arith.addf %9, %8 : vector<24x256xf32>
    %11 = arith.divf %9, %10 : vector<24x256xf32>
    %c0_7 = arith.constant 0 : index
    %c3 = arith.constant 3 : index
    %12 = vector.load %arg4[%c0_7, %c3] : memref<24x8xf32, #tpu.memory_space<vmem>>, vector<24x1xf32>
    %c0_8 = arith.constant 0 : index
    %c0_9 = arith.constant 0 : index
    %13 = vector.load %arg5[%c0_8, %c0_9] : memref<2x256xf32, #tpu.memory_space<vmem>>, vector<1x256xf32>
    %14 = vector.broadcast %12 : vector<24x1xf32> to vector<24x256xf32>
    %15 = vector.broadcast %13 : vector<1x256xf32> to vector<24x256xf32>
    %16 = arith.mulf %14, %15 : vector<24x256xf32>
    %c0_10 = arith.constant 0 : index
    %c4 = arith.constant 4 : index
    %17 = vector.load %arg4[%c0_10, %c4] : memref<24x8xf32, #tpu.memory_space<vmem>>, vector<24x1xf32>
    %c1 = arith.constant 1 : index
    %c0_11 = arith.constant 0 : index
    %18 = vector.load %arg5[%c1, %c0_11] : memref<2x256xf32, #tpu.memory_space<vmem>>, vector<1x256xf32>
    %19 = vector.broadcast %17 : vector<24x1xf32> to vector<24x256xf32>
    %20 = vector.broadcast %18 : vector<1x256xf32> to vector<24x256xf32>
    %21 = arith.mulf %19, %20 : vector<24x256xf32>
    %22 = arith.addf %16, %21 : vector<24x256xf32>
    %c0_12 = arith.constant 0 : index
    %c1_13 = arith.constant 1 : index
    %23 = vector.load %arg4[%c0_12, %c1_13] : memref<24x8xf32, #tpu.memory_space<vmem>>, vector<24x1xf32>
    %c0_14 = arith.constant 0 : index
    %c2 = arith.constant 2 : index
    %24 = vector.load %arg4[%c0_14, %c2] : memref<24x8xf32, #tpu.memory_space<vmem>>, vector<24x1xf32>
    %25 = vector.broadcast %24 : vector<24x1xf32> to vector<24x256xf32>
    %26 = arith.mulf %11, %25 : vector<24x256xf32>
    %27 = vector.broadcast %23 : vector<24x1xf32> to vector<24x256xf32>
    %28 = arith.addf %27, %26 : vector<24x256xf32>
    %29 = arith.mulf %11, %28 : vector<24x256xf32>
    %30 = arith.addf %29, %22 : vector<24x256xf32>
    %c0_15 = arith.constant 0 : index
    %c0_16 = arith.constant 0 : index
    %c0_17 = arith.constant 0 : index
    %31 = vector.load %arg6[%c0_15, %c0_16, %c0_17] : memref<1x24x256xf32, #tpu.memory_space<vmem>>, vector<1x24x256xf32>
    %32 = vector.shape_cast %31 : vector<1x24x256xf32> to vector<24x256xf32>
    %33 = vector.shape_cast %30 : vector<24x256xf32> to vector<1x24x256xf32>
    tpu.vector_store %arg6[%c0_15, %c0_16, %c0_17], %33 {strides = array<i32>} : memref<1x24x256xf32, #tpu.memory_space<vmem>>, vector<1x24x256xf32>,
    return
  }
  func.func @transform_0(%arg0: i32, %arg1: i32) -> (i32, i32, i32) {
    %c0_i32 = arith.constant 0 : i32
    %c0_i32_0 = arith.constant 0 : i32
    return %arg1, %c0_i32, %arg0 : i32, i32, i32
  }
  func.func @transform_1(%arg0: i32, %arg1: i32) -> (i32, i32) {
    %c0_i32 = arith.constant 0 : i32
    %c0_i32_0 = arith.constant 0 : i32
    %c0_i32_1 = arith.constant 0 : i32
    return %c0_i32, %c0_i32_0 : i32, i32
  }
  func.func @transform_2(%arg0: i32, %arg1: i32) -> (i32, i32) {
    %c0_i32 = arith.constant 0 : i32
    %c0_i32_0 = arith.constant 0 : i32
    %c0_i32_1 = arith.constant 0 : i32
    return %c0_i32, %c0_i32_0 : i32, i32
  }
  func.func @transform_3(%arg0: i32, %arg1: i32) -> (i32, i32) {
    %c0_i32 = arith.constant 0 : i32
    %c0_i32_0 = arith.constant 0 : i32
    return %c0_i32, %arg0 : i32, i32
  }
  func.func @transform_4(%arg0: i32, %arg1: i32) -> (i32, i32, i32) {
    %c0_i32 = arith.constant 0 : i32
    %c0_i32_0 = arith.constant 0 : i32
    return %arg1, %c0_i32, %arg0 : i32, i32, i32
  }
}

</mosaic_0001>

<llo_original>
// kernel: tpu_custom_call.1
$region0: #{tpu_custom_call.1}
  #allocation0 [shape = 'u32[]', space=smem, size = 0x4, offset = 0x4, fixed_abs, tag = 'smem constant byte address 0x4 - core index']
  #allocation1 [shape = 'u32[144,128]{1,0:T(1,128)}', space=vmem, size = 0x12000, scoped, tag = 'internal scratch']
  %s0 = inlined_call_operand.vmem [shape: f32[2,8,256], index: 0, kind: input, shape index: {}]
  %s1 = inlined_call_operand.vmem [shape: f32[24,8], index: 1, kind: input, shape index: {}]
  %s2 = inlined_call_operand.vmem [shape: f32[24,8], index: 2, kind: input, shape index: {}]
  %s3 = inlined_call_operand.vmem [shape: f32[2,256], index: 3, kind: input, shape index: {}]
  %s4 = inlined_call_operand.hbm [shape: f32[2,24,256], index: 4, kind: output, shape index: {}]
  %s5 = sld [smem:[#allocation0]]
  $region49: #{tpu_custom_call.1} parent=0
    _
  %s7 = ssub.s32 1, %s5
  %s8 = scalar_select 0, %s7, %s5
  $region1: #{tpu_custom_call.1} parent=0
    #allocation2 [shape = 'u8[49152]{0}', space=vmem, size = 0xc000, scoped, tag = 'output window, operand 0']
    #allocation3 [shape = 's32[2]{0}', space=sflag, size = 0x8, scoped, tag = 'scoped memory for tpu_custom_call.1']
    %9 = vsyncpa [#allocation3], 0
    %s10 = scalar_lea.sflag [#allocation3], 1
    %11 = vsyncpa %s10, 0
    loop: start=0, step=1, limit=4
    $region2: #{tpu_custom_call.1} parent=1 // loop_pre_header
      _
    $region3: #{tpu_custom_call.1} parent=1 // loop_header
      %s13 = sphi 0, %s17
      %p14 = scmp.ge.s32.totalorder %s13, 4
      %s20 = sphi 0, %s32
      %s21 = sphi 0, %s28
      %s22 = sphi 0, %s20
      %s23 = sphi 0, %s21
      %s24 = sphi 0, %s22
      %s25 = sphi 0, %s23
      %s37 = sphi 0, %s39
      %s40 = sphi 0, %s37
      %s41 = sphi 0, %s40
      %s57 = sphi 0, %s41
      %s61 = sphi 0, %s61
      %s63 = sphi 0, %s61
      %s64 = sphi 0, %s63
      %s78 = sphi 0, %s64
      %s82 = sphi 0, %s82
      %s84 = sphi 0, %s82
      %s85 = sphi 0, %s84
      %s99 = sphi 0, %s85
      %s105 = sphi 0, %s107
      %s108 = sphi 0, %s105
      %s109 = sphi 0, %s108
      %s125 = sphi 0, %s109
      %s133 = sphi 0, %s135
      %s136 = sphi 0, %s133
      %s137 = sphi 0, %s136
      %s153 = sphi 0, %s137
    $region4: #{tpu_custom_call.1} parent=1 // loop_header_branch
      %16 = sbr.rel (%p14) target = $region8
    $region5: #{tpu_custom_call.1} parent=1 // loop_body
      %s18 = ssub.s32 %s13, 1
      %s19 = ssub.s32 %s13, 2
      %s26 = sadd.s32 1, %s21
      %p27 = scmp.ge.s32.totalorder %s26, 2
      %s28 = scalar_select %p27, 0, %s26
      %s29 = sadd.s32 1, %s20
      %s30 = scalar_select %p27, %s29, %s20
      %p31 = scmp.ge.s32.totalorder %s30, 1
      %s32 = scalar_select %p31, 0, %s30
      %s33 = ssub.s32 %s21, %s28
      %s34 = ssub.s32 %s20, %s32
      %s35 = sor.u32 %s33, %s34
      %p36 = scmp.eq.s32.totalorder %s35, 0
      %s38 = sadd.s32 %s37, 1
      %s39 = scalar_select %p36, %s37, %s38
      %p42 = pneg %p36
      %p43 = scmp.eq.s32.totalorder %s13, 1
      %p44 = por %p42, %p43
      %p45 = scmp.ne.s32.totalorder %s37, %s40
      %p46 = scmp.eq.s32.totalorder %s13, 0
      %p47 = por %p45, %p46
      %p48 = scmp.ne.s32.totalorder %s37, %s40
      %p49 = scmp.eq.s32.totalorder %s18, 1
      %p50 = por %p48, %p49
      %p51 = scmp.ne.s32.totalorder %s40, %s41
      %p52 = scmp.eq.s32.totalorder %s18, 0
      %p53 = por %p51, %p52
      %p54 = scmp.ne.s32.totalorder %s40, %s41
      %p55 = scmp.eq.s32.totalorder %s19, 1
      %p56 = por %p54, %p55
      %p58 = scmp.ne.s32.totalorder %s41, %s57
      %p59 = scmp.eq.s32.totalorder %s19, 0
      %p60 = por %p58, %p59
      %s62 = sadd.s32 %s61, 1
      %p65 = scmp.eq.s32.totalorder %s13, 1
      %p66 = scmp.ne.s32.totalorder %s61, %s63
      %p67 = scmp.eq.s32.totalorder %s13, 0
      %p68 = por %p66, %p67
      %p69 = scmp.ne.s32.totalorder %s61, %s63
      %p70 = scmp.eq.s32.totalorder %s18, 1
      %p71 = por %p69, %p70
      %p72 = scmp.ne.s32.totalorder %s63, %s64
      %p73 = scmp.eq.s32.totalorder %s18, 0
      %p74 = por %p72, %p73
      %p75 = scmp.ne.s32.totalorder %s63, %s64
      %p76 = scmp.eq.s32.totalorder %s19, 1
      %p77 = por %p75, %p76
      %p79 = scmp.ne.s32.totalorder %s64, %s78
      %p80 = scmp.eq.s32.totalorder %s19, 0
      %p81 = por %p79, %p80
      %s83 = sadd.s32 %s82, 1
      %p86 = scmp.eq.s32.totalorder %s13, 1
      %p87 = scmp.ne.s32.totalorder %s82, %s84
      %p88 = scmp.eq.s32.totalorder %s13, 0
      %p89 = por %p87, %p88
      %p90 = scmp.ne.s32.totalorder %s82, %s84
      %p91 = scmp.eq.s32.totalorder %s18, 1
      %p92 = por %p90, %p91
      %p93 = scmp.ne.s32.totalorder %s84, %s85
      %p94 = scmp.eq.s32.totalorder %s18, 0
      %p95 = por %p93, %p94
      %p96 = scmp.ne.s32.totalorder %s84, %s85
      %p97 = scmp.eq.s32.totalorder %s19, 1
      %p98 = por %p96, %p97
      %p100 = scmp.ne.s32.totalorder %s85, %s99
      %p101 = scmp.eq.s32.totalorder %s19, 0
      %p102 = por %p100, %p101
      %s103 = ssub.s32 %s20, %s32
      %p104 = scmp.eq.s32.totalorder %s103, 0
      %s106 = sadd.s32 %s105, 1
      %s107 = scalar_select %p104, %s105, %s106
      %p110 = pneg %p104
      %p111 = scmp.eq.s32.totalorder %s13, 1
      %p112 = por %p110, %p111
      %p113 = scmp.ne.s32.totalorder %s105, %s108
      %p114 = scmp.eq.s32.totalorder %s13, 0
      %p115 = por %p113, %p114
      %p116 = scmp.ne.s32.totalorder %s105, %s108
      %p117 = scmp.eq.s32.totalorder %s18, 1
      %p118 = por %p116, %p117
      %p119 = scmp.ne.s32.totalorder %s108, %s109
      %p120 = scmp.eq.s32.totalorder %s18, 0
      %p121 = por %p119, %p120
      %p122 = scmp.ne.s32.totalorder %s108, %s109
      %p123 = scmp.eq.s32.totalorder %s19, 1
      %p124 = por %p122, %p123
      %p126 = scmp.ne.s32.totalorder %s109, %s125
      %p127 = scmp.eq.s32.totalorder %s19, 0
      %p128 = por %p126, %p127
      %s129 = ssub.s32 %s21, %s28
      %s130 = ssub.s32 %s20, %s32
      %s131 = sor.u32 %s129, %s130
      %p132 = scmp.eq.s32.totalorder %s131, 0
      %s134 = sadd.s32 %s133, 1
      %s135 = scalar_select %p132, %s133, %s134
      %p138 = pneg %p132
      %p139 = scmp.eq.s32.totalorder %s13, 1
      %p140 = por %p138, %p139
      %p141 = scmp.ne.s32.totalorder %s133, %s136
      %p142 = scmp.eq.s32.totalorder %s13, 0
      %p143 = por %p141, %p142
      %p144 = scmp.ne.s32.totalorder %s133, %s136
      %p145 = scmp.eq.s32.totalorder %s18, 1
      %p146 = por %p144, %p145
      %p147 = scmp.ne.s32.totalorder %s136, %s137
      %p148 = scmp.eq.s32.totalorder %s18, 0
      %p149 = por %p147, %p148
      %p150 = scmp.ne.s32.totalorder %s136, %s137
      %p151 = scmp.eq.s32.totalorder %s19, 1
      %p152 = por %p150, %p151
      %p154 = scmp.ne.s32.totalorder %s137, %s153
      %p155 = scmp.eq.s32.totalorder %s19, 0
      %p156 = por %p154, %p155
      %p157 = scmp.le.s32.totalorder 1, %s13
      %p158 = scmp.lt.s32.totalorder %s13, 3
      %p159 = pnand %p157, %p158
      %p160 = pneg %p159
      // Predicated region
      $region9: #{tpu_custom_call.1} parent=5 // pred_check
        _
      $region10: #{tpu_custom_call.1} parent=5 // pred_check_branch
        %162 = sbr.rel (%p159) target = $region12
      $region11: #{tpu_custom_call.1} parent=5 // pred_region
        %s163 = ssub.s32 %s13, 1
        // Predicated region
        $region13: #{tpu_custom_call.1} parent=11 // pred_check
          %p164 = pneg %p74
        $region14: #{tpu_custom_call.1} parent=11 // pred_check_branch
          %166 = sbr.rel (%p164) target = $region16
        $region15: #{tpu_custom_call.1} parent=11 // pred_region
          _
        $region16: #{tpu_custom_call.1} parent=11 // pred_fallthru
          _
        // Predicated region
        $region17: #{tpu_custom_call.1} parent=11 // pred_check
          %p167 = pneg %p95
        $region18: #{tpu_custom_call.1} parent=11 // pred_check_branch
          %169 = sbr.rel (%p167) target = $region20
        $region19: #{tpu_custom_call.1} parent=11 // pred_region
          _
        $region20: #{tpu_custom_call.1} parent=11 // pred_fallthru
          _
        // Predicated region
        $region21: #{tpu_custom_call.1} parent=11 // pred_check
          %p170 = pneg %p121
        $region22: #{tpu_custom_call.1} parent=11 // pred_check_branch
          %172 = sbr.rel (%p170) target = $region24
        $region23: #{tpu_custom_call.1} parent=11 // pred_region
          %s173 = smul.u32 2, %s22
          %p174 = scmp.lt.s32.totalorder %s173, 1
          %s175 = scalar_select %p174, %s173, 1
          %s176 = smul.addr %s175, 2
          %s177 = scalar_lea.vmem %s3, %s176
          %s178 = smul.u32 2, %s22
        $region24: #{tpu_custom_call.1} parent=11 // pred_fallthru
          _
      $region12: #{tpu_custom_call.1} parent=5 // pred_fallthru
        _
      %p179 = scmp.lt.s32.totalorder %s13, 2
      // Predicated region
      $region25: #{tpu_custom_call.1} parent=5 // pred_check
        %p180 = pneg %p179
      $region26: #{tpu_custom_call.1} parent=5 // pred_check_branch
        %182 = sbr.rel (%p180) target = $region28
      $region27: #{tpu_custom_call.1} parent=5 // pred_region
        // Predicated region
        $region29: #{tpu_custom_call.1} parent=27 // pred_check
          %p183 = pneg %p47
        $region30: #{tpu_custom_call.1} parent=27 // pred_check_branch
          %185 = sbr.rel (%p183) target = $region32
        $region31: #{tpu_custom_call.1} parent=27 // pred_region
          %s186 = smul.u32 2, %s20
          %p187 = scmp.lt.s32.totalorder %s21, 1
          %s188 = scalar_select %p187, %s21, 1
          %p189 = scmp.lt.s32.totalorder %s186, 1
          %s190 = scalar_select %p189, %s186, 1
          %s191 = smul.addr %s188, 2
          %s192 = sadd.s32 %s190, %s191
          %s193 = smul.addr %s192, 8
          %s194 = scalar_lea.vmem %s0, %s193
          %s195 = smul.u32 2, %s20
        $region32: #{tpu_custom_call.1} parent=27 // pred_fallthru
          _
      $region28: #{tpu_custom_call.1} parent=5 // pred_fallthru
        _
      %p196 = scmp.le.s32.totalorder 1, %s13
      %p197 = scmp.lt.s32.totalorder %s13, 3
      %p198 = pnand %p196, %p197
      %p199 = pneg %p198
      // Predicated region
      $region33: #{tpu_custom_call.1} parent=5 // pred_check
        _
      $region34: #{tpu_custom_call.1} parent=5 // pred_check_branch
        %201 = sbr.rel (%p198) target = $region36
      $region35: #{tpu_custom_call.1} parent=5 // pred_region
        %s202 = ssub.s32 %s13, 1
        %s203 = smul.u32 2, %s22
        %p204 = scmp.lt.s32.totalorder %s23, 1
        %s205 = scalar_select %p204, %s23, 1
        %p206 = scmp.lt.s32.totalorder %s203, 1
        %s207 = scalar_select %p206, %s203, 1
        %s208 = smul.addr %s205, 2
        %s209 = sadd.s32 %s207, %s208
        %s210 = smul.addr %s209, 8
        %s211 = scalar_lea.vmem %s0, %s210
        %p212 = pneg %p53
        %p213 = pneg %p50
        %p214 = pneg %p74
        %p215 = pneg %p71
        %p216 = pneg %p95
        %p217 = pneg %p92
        %s218 = smul.u32 2, %s22
        %p219 = scmp.lt.s32.totalorder %s218, 1
        %s220 = scalar_select %p219, %s218, 1
        %s221 = smul.addr %s220, 2
        %s222 = scalar_lea.vmem %s3, %s221
        %p223 = pneg %p121
        %p224 = pneg %p118
        %p225 = pneg %p149
        %p226 = pneg %p146
        %s227 = sand.u32 %s136, 1
        %s228 = scalar_lea.sflag [#allocation3], %s227
        %s229 = sand.u32 %s136, 1
        %s230 = smul.addr %s229, 48
        %s231 = scalar_lea.vmem [#allocation2], %s230
        %s232 = smul.u32 2, %s22
        %p233 = scmp.lt.s32.totalorder %s23, 1
        %s234 = scalar_select %p233, %s23, 1
        %p235 = scmp.lt.s32.totalorder %s232, 1
        %s236 = scalar_select %p235, %s232, 1
        %s237 = smul.addr %s234, 2
        %s238 = sadd.s32 %s236, %s237
        %s239 = smul.addr %s238, 8
        %s240 = scalar_lea.vmem %s0, %s239
        %s241 = smul.u32 2, %s22
        %s242 = smul.u32 2, %s22
        %p243 = scmp.lt.s32.totalorder %s242, 1
        %s244 = scalar_select %p243, %s242, 1
        %s245 = smul.addr %s244, 2
        %s246 = scalar_lea.vmem %s3, %s245
        %s247 = smul.u32 2, %s22
        %s248 = smul.u32 2, %s22
        %v249 = vld [vmem:[%s1] sm:$0xff]
        %v250 = vld [vmem:[%s1 + $0x8] sm:$0xff]
        %v251 = vld [vmem:[%s1 + $0x10] sm:$0xff]
        %v252 = vld [vmem:[%s240] sm:$0xff]
        %v253 = vld [vmem:[%s240 + $0x8] sm:$0xff]
        %v254 = vld [vmem:[%s2] sm:$0xff]
        %v255 = vld [vmem:[%s2 + $0x8] sm:$0xff]
        %v256 = vld [vmem:[%s2 + $0x10] sm:$0xff]
        %258 = vset.pattern.permute.xlu0 0
        %259 = vperm.xlu0 %258, %v254
        %v260 = vpop.permute.xlu0 %259
        %263 = vset.pattern.permute.xlu0 0
        %264 = vperm.xlu0 %263, %v255
        %v265 = vpop.permute.xlu0 %264
        %268 = vset.pattern.permute.xlu0 0
        %269 = vperm.xlu0 %268, %v256
        %v270 = vpop.permute.xlu0 %269
        %vm272 = vcmask 64512
        %v274 = vsel %vm272, %v249, 0
        %v277 = vsel %vm272, %v250, 0
        %v280 = vsel %vm272, %v251, 0
        %282 = vmatprep.subr.mxu0 %v253
        %283 = vmatpush1.msra.mxu0 %v252
        %284 = vmatprep.subr.mxu0 0.0
        %285 = vmatpush1.msra.mxu0 0.0
        %286 = vmatprep.subr.mxu0 0.0
        %287 = vmatpush1.msra.mxu0 0.0
        %288 = vmatprep.subr.mxu0 0.0
        %289 = vmatpush1.msra.mxu0 0.0
        %290 = vmatprep.subr.mxu0 0.0
        %291 = vmatpush1.msra.mxu0 0.0
        %292 = vmatprep.subr.mxu0 0.0
        %293 = vmatpush1.msra.mxu0 0.0
        %294 = vmatprep.subr.mxu0 0.0
        %295 = vmatpush1.msra.mxu0 0.0
        %296 = vmatprep.subr.mxu0 0.0
        %297 = vmatpush1.msra.mxu0 0.0
        %298 = vmatprep.subr.mxu0 0.0
        %299 = vmatpush1.msra.mxu0 0.0
        %300 = vmatprep.subr.mxu0 0.0
        %301 = vmatpush1.msra.mxu0 0.0
        %302 = vmatprep.subr.mxu0 0.0
        %303 = vmatpush1.msra.mxu0 0.0
        %304 = vmatprep.subr.mxu0 0.0
        %305 = vmatpush1.msra.mxu0 0.0
        %306 = vmatprep.subr.mxu0 0.0
        %307 = vmatpush1.msra.mxu0 0.0
        %308 = vmatprep.subr.mxu0 0.0
        %309 = vmatpush1.msra.mxu0 0.0
        %310 = vmatprep.subr.mxu0 0.0
        %311 = vmatpush1.msra.mxu0 0.0
        %312 = vmatprep.subr.mxu0 0.0
        %313 = vmatpush1.msra.mxu0 0.0
        %314 = vmatprep.subr.mxu0 0.0
        %315 = vmatpush1.msra.mxu0 0.0
        %316 = vmatprep.subr.mxu0 0.0
        %317 = vmatpush1.msra.mxu0 0.0
        %318 = vmatprep.subr.mxu0 0.0
        %319 = vmatpush1.msra.mxu0 0.0
        %320 = vmatprep.subr.mxu0 0.0
        %321 = vmatpush1.msra.mxu0 0.0
        %322 = vmatprep.subr.mxu0 0.0
        %323 = vmatpush1.msra.mxu0 0.0
        %324 = vmatprep.subr.mxu0 0.0
        %325 = vmatpush1.msra.mxu0 0.0
        %326 = vmatprep.subr.mxu0 0.0
        %327 = vmatpush1.msra.mxu0 0.0
        %328 = vmatprep.subr.mxu0 0.0
        %329 = vmatpush1.msra.mxu0 0.0
        %330 = vmatprep.subr.mxu0 0.0
        %331 = vmatpush1.msra.mxu0 0.0
        %332 = vmatprep.subr.mxu0 0.0
        %333 = vmatpush1.msra.mxu0 0.0
        %334 = vmatprep.subr.mxu0 0.0
        %335 = vmatpush1.msra.mxu0 0.0
        %336 = vmatprep.subr.mxu0 0.0
        %337 = vmatpush1.msra.mxu0 0.0
        %338 = vmatprep.subr.mxu0 0.0
        %339 = vmatpush1.msra.mxu0 0.0
        %340 = vmatprep.subr.mxu0 0.0
        %341 = vmatpush1.msra.mxu0 0.0
        %342 = vmatprep.subr.mxu0 0.0
        %343 = vmatpush1.msra.mxu0 0.0
        %344 = vmatprep.subr.mxu0 0.0
        %345 = vmatpush1.msra.mxu0 0.0
        %346 = vmatprep.mubr.f32.mxu0 0.0
        %347 = vmatmul.mubr.f32.gmra.mrb[0].mxu0 %v274
        %v348 = vpop.f32.mrb[0].mxu0
        %v349 = vadd.f32 %v260, %v348
        %v350 = vpop.f32.mrb[0].mxu0
        %v351 = vadd.f32 %v260, %v350
        %352 = vmatprep.mubr.f32.mxu0 0.0
        %353 = vmatmul.mubr.f32.gmra.mrb[0].mxu0 %v277
        %v354 = vpop.f32.mrb[0].mxu0
        %v355 = vadd.f32 %v265, %v354
        %v356 = vpop.f32.mrb[0].mxu0
        %v357 = vadd.f32 %v265, %v356
        %358 = vmatprep.mubr.f32.mxu0 0.0
        %359 = vmatmul.mubr.f32.gmra.mrb[0].mxu0 %v280
        %v360 = vpop.f32.mrb[0].mxu0
        %v361 = vadd.f32 %v270, %v360
        %v362 = vpop.f32.mrb[0].mxu0
        %v363 = vadd.f32 %v270, %v362
        %364 = vdwg.mxu0
        %v365 = vxor.u32 %v349, 2147483648
        %v366 = vxor.u32 %v351, 2147483648
        %v367 = vxor.u32 %v355, 2147483648
        %v368 = vxor.u32 %v357, 2147483648
        %v369 = vxor.u32 %v361, 2147483648
        %v370 = vxor.u32 %v363, 2147483648
        %v371 = vmul.f32 %v365, 1.442695
        %v372 = vpow.pop %v371
        %v373 = vmul.f32 %v366, 1.442695
        %v374 = vpow.pop %v373
        %v375 = vmul.f32 %v367, 1.442695
        %v376 = vpow.pop %v375
        %v377 = vmul.f32 %v368, 1.442695
        %v378 = vpow.pop %v377
        %v379 = vmul.f32 %v369, 1.442695
        %v380 = vpow.pop %v379
        %v381 = vmul.f32 %v370, 1.442695
        %v382 = vpow.pop %v381
        %v383 = vadd.f32 %v372, 1.0
        %v384 = vadd.f32 %v374, 1.0
        %v385 = vadd.f32 %v376, 1.0
        %v386 = vadd.f32 %v378, 1.0
        %v387 = vadd.f32 %v380, 1.0
        %v388 = vadd.f32 %v382, 1.0
        %v389 = vrcp.pop %v383
        %v390 = vmul.f32 1.0, %v389
        %v391 = vrcp.pop %v384
        %v392 = vmul.f32 1.0, %v391
        %v393 = vrcp.pop %v385
        %v394 = vmul.f32 1.0, %v393
        %v395 = vrcp.pop %v386
        %v396 = vmul.f32 1.0, %v395
        %v397 = vrcp.pop %v387
        %v398 = vmul.f32 1.0, %v397
        %v399 = vrcp.pop %v388
        %v400 = vmul.f32 1.0, %v399
        %v401 = vld [vmem:[%s246] ss:$2 sm:$0x3]
        %402 = vset.pattern.permute.xlu0 3
        %403 = vperm.xlu0 %402, %v254
        %v404 = vpop.permute.xlu0 %403
        %406 = vset.pattern.permute.xlu0 3
        %407 = vperm.xlu0 %406, %v255
        %v408 = vpop.permute.xlu0 %407
        %410 = vset.pattern.permute.xlu0 3
        %411 = vperm.xlu0 %410, %v256
        %v412 = vpop.permute.xlu0 %411
        %v415 = vlaneseq
        %v416 = vshrl.u32 %v415, 7
        %v417 = vsub.s32 0, %v416
        %v418 = vrot.slane %v401, %v417
        %v419 = vlaneseq
        %v420 = vshrl.u32 %v419, 7
        %v421 = vsub.s32 1, %v420
        %v422 = vrot.slane %v401, %v421
        %v425 = vmul.f32 %v404, %v418
        %v426 = vmul.f32 %v404, %v422
        %v427 = vmul.f32 %v408, %v418
        %v428 = vmul.f32 %v408, %v422
        %v429 = vmul.f32 %v412, %v418
        %v430 = vmul.f32 %v412, %v422
        %s431 = scalar_lea.vmem %s246, 1
        %v432 = vld [vmem:[%s431] ss:$2 sm:$0x3]
        %433 = vset.pattern.permute.xlu0 4
        %434 = vperm.xlu0 %433, %v254
        %v435 = vpop.permute.xlu0 %434
        %437 = vset.pattern.permute.xlu0 4
        %438 = vperm.xlu0 %437, %v255
        %v439 = vpop.permute.xlu0 %438
        %441 = vset.pattern.permute.xlu0 4
        %442 = vperm.xlu0 %441, %v256
        %v443 = vpop.permute.xlu0 %442
        %v446 = vlaneseq
        %v447 = vshrl.u32 %v446, 7
        %v448 = vsub.s32 0, %v447
        %v449 = vrot.slane %v432, %v448
        %v450 = vlaneseq
        %v451 = vshrl.u32 %v450, 7
        %v452 = vsub.s32 1, %v451
        %v453 = vrot.slane %v432, %v452
        %v456 = vmul.f32 %v435, %v449
        %v457 = vmul.f32 %v435, %v453
        %v458 = vmul.f32 %v439, %v449
        %v459 = vmul.f32 %v439, %v453
        %v460 = vmul.f32 %v443, %v449
        %v461 = vmul.f32 %v443, %v453
        %v462 = vadd.f32 %v425, %v456
        %v463 = vadd.f32 %v426, %v457
        %v464 = vadd.f32 %v427, %v458
        %v465 = vadd.f32 %v428, %v459
        %v466 = vadd.f32 %v429, %v460
        %v467 = vadd.f32 %v430, %v461
        %468 = vset.pattern.permute.xlu0 2
        %469 = vperm.xlu0 %468, %v254
        %v470 = vpop.permute.xlu0 %469
        %472 = vset.pattern.permute.xlu0 2
        %473 = vperm.xlu0 %472, %v255
        %v474 = vpop.permute.xlu0 %473
        %476 = vset.pattern.permute.xlu0 2
        %477 = vperm.xlu0 %476, %v256
        %v478 = vpop.permute.xlu0 %477
        %v480 = vmul.f32 %v390, %v470
        %v481 = vmul.f32 %v392, %v470
        %v482 = vmul.f32 %v394, %v474
        %v483 = vmul.f32 %v396, %v474
        %v484 = vmul.f32 %v398, %v478
        %v485 = vmul.f32 %v400, %v478
        %486 = vset.pattern.permute.xlu0 1
        %487 = vperm.xlu0 %486, %v254
        %v488 = vpop.permute.xlu0 %487
        %490 = vset.pattern.permute.xlu0 1
        %491 = vperm.xlu0 %490, %v255
        %v492 = vpop.permute.xlu0 %491
        %494 = vset.pattern.permute.xlu0 1
        %495 = vperm.xlu0 %494, %v256
        %v496 = vpop.permute.xlu0 %495
        %v498 = vadd.f32 %v488, %v480
        %v499 = vadd.f32 %v488, %v481
        %v500 = vadd.f32 %v492, %v482
        %v501 = vadd.f32 %v492, %v483
        %v502 = vadd.f32 %v496, %v484
        %v503 = vadd.f32 %v496, %v485
        %v504 = vmul.f32 %v390, %v498
        %v505 = vmul.f32 %v392, %v499
        %v506 = vmul.f32 %v394, %v500
        %v507 = vmul.f32 %v396, %v501
        %v508 = vmul.f32 %v398, %v502
        %v509 = vmul.f32 %v400, %v503
        %v510 = vadd.f32 %v504, %v462
        %v511 = vadd.f32 %v505, %v463
        %v512 = vadd.f32 %v506, %v464
        %v513 = vadd.f32 %v507, %v465
        %v514 = vadd.f32 %v508, %v466
        %v515 = vadd.f32 %v509, %v467
        %516 = vst [vmem:[%s231] sm:$0xff] %v510
        %517 = vst [vmem:[%s231 + $0x8] sm:$0xff] %v511
        %518 = vst [vmem:[%s231 + $0x10] sm:$0xff] %v512
        %519 = vst [vmem:[%s231 + $0x18] sm:$0xff] %v513
        %520 = vst [vmem:[%s231 + $0x20] sm:$0xff] %v514
        %521 = vst [vmem:[%s231 + $0x28] sm:$0xff] %v515
        %s522 = sand.u32 %s136, 1
        %s523 = scalar_lea.sflag [#allocation3], %s522
        %s524 = sand.u32 %s136, 1
        %s525 = smul.addr %s524, 48
        %s526 = scalar_lea.vmem [#allocation2], %s525
        // Predicated region
        $region37: #{tpu_custom_call.1} parent=35 // pred_check
          %p527 = pneg %p146
        $region38: #{tpu_custom_call.1} parent=35 // pred_check_branch
          %529 = sbr.rel (%p527) target = $region40
        $region39: #{tpu_custom_call.1} parent=35 // pred_region
          %s530 = smul.u32 2, %s22
          %s532 = ssub.s32 768, 768
          %533 = vsyncadd %s523, %s532
          %s534 = smul.addr %s23, 6
          %s535 = sadd.s32 %s530, %s534
          %s536 = smul.addr %s535, 128
          %s537 = scalar_lea.hbm %s4, %s536
          %s538 = sshll.u32 %s526, 4
          %s539 = int_to_ptr.vmem [resolvable:$true] %s538
          %544 = dma.vmem_to_hbm [thread:$0]  %s539, 768, %s537, %s523, 256, 256, 16
        $region40: #{tpu_custom_call.1} parent=35 // pred_fallthru
          _
      $region36: #{tpu_custom_call.1} parent=5 // pred_fallthru
        _
      %p545 = scmp.le.s32.totalorder 2, %s13
      // Predicated region
      $region41: #{tpu_custom_call.1} parent=5 // pred_check
        %p546 = pneg %p545
      $region42: #{tpu_custom_call.1} parent=5 // pred_check_branch
        %548 = sbr.rel (%p546) target = $region44
      $region43: #{tpu_custom_call.1} parent=5 // pred_region
        %s549 = ssub.s32 %s13, 2
        // Predicated region
        $region45: #{tpu_custom_call.1} parent=43 // pred_check
          %p550 = pneg %p152
        $region46: #{tpu_custom_call.1} parent=43 // pred_check_branch
          %552 = sbr.rel (%p550) target = $region48
        $region47: #{tpu_custom_call.1} parent=43 // pred_region
          %s553 = sand.u32 %s137, 1
          %s554 = scalar_lea.sflag [#allocation3], %s553
          %s555 = sand.u32 %s137, 1
          %s556 = smul.addr %s555, 48
          %s557 = scalar_lea.vmem [#allocation2], %s556
          %558 = dma.done %s554, 768
        $region48: #{tpu_custom_call.1} parent=43 // pred_fallthru
          _
      $region44: #{tpu_custom_call.1} parent=5 // pred_fallthru
        _
    $region6: #{tpu_custom_call.1} parent=1 // loop_footer
      %s17 = sadd.s32 1, %s13
    $region7: #{tpu_custom_call.1} parent=1 // loop_footer_branch
      %12 = sbr.rel target = $region3
    $region8: #{tpu_custom_call.1} parent=1 // loop_exit
      _
    %559 = vsyncpa [#allocation3], 1
    %s560 = scalar_lea.sflag [#allocation3], 1
    %561 = vsyncpa %s560, 1

</llo_original>
